<compile_context>
chip_gen: v5e
topology: v5e:2x2
jax: 0.10.0
libtpu: 0.0.40
codegen_flags: <defaults>
</compile_context>

<pallas_src>
import functools

import jax
import jax.numpy as jnp
from jax.experimental import pallas as pl
from jax.experimental.pallas import tpu as pltpu

POWER = 2  # matches Normalize(power=2)


def _round_up(n, m):
    return ((n + m - 1) // m) * m


def _sublane_multiple(itemsize):
    # Sub-32-bit dtypes pack along sublanes: f32 -> 8, bf16 -> 16, int8/fp8 -> 32.
    return 8 * max(1, 4 // int(itemsize))


def _vmem_capacity_bytes():
    try:
        return int(pltpu.get_tpu_info().vmem_capacity_bytes)
    except Exception:
        return 64 * 1024 * 1024  # conservative default (v7x per-core VMEM)


# --------------------------------------------------------------------------
# Fast path: each block holds `tile_rows` complete feature rows.
# --------------------------------------------------------------------------
def _normalize_kernel(x_ref, o_ref):
    x = x_ref[...]
    # Sum of squares along the feature (lane) axis, accumulated in f32.  The f32
    # promotion lives only inside this expression (no full-tile f32 copy kept).
    s = jnp.sum(jnp.square(x.astype(jnp.float32)), axis=-1, keepdims=True)
    # 1/sqrt on the EUP; broadcast scale on the VPU in the input dtype.
    inv = jax.lax.rsqrt(s).astype(x.dtype)
    o_ref[...] = (x * inv).astype(o_ref.dtype)


# --------------------------------------------------------------------------
# Large-D path: feature axis tiled too.  Two phases per row tile:
#   phase 0: accumulate sum(x^2) per row into a VMEM scratch
#   phase 1: rsqrt + scale + store each feature chunk
# --------------------------------------------------------------------------
def _normalize_split_kernel(x_ref, o_ref, ssum_ref, *, d_total, d_tile):
    phase = pl.program_id(1)
    k = pl.program_id(2)

    @pl.when(jnp.logical_and(phase == 0, k == 0))
    def _():
        ssum_ref[...] = jnp.zeros_like(ssum_ref)

    @pl.when(phase == 0)
    def _():
        x = x_ref[...].astype(jnp.float32)
        # Mask out-of-bounds lanes of a ragged last feature block so garbage
        # does not contaminate the row sum.
        lane = jax.lax.broadcasted_iota(jnp.int32, x.shape, 1)
        x = jnp.where(k * d_tile + lane < d_total, x, 0.0)
        ssum_ref[...] += jnp.sum(x * x, axis=-1, keepdims=True)

    @pl.when(phase == 1)
    def _():
        x = x_ref[...]
        inv = jax.lax.rsqrt(ssum_ref[...]).astype(x.dtype)
        o_ref[...] = (x * inv).astype(o_ref.dtype)


def normalize(x, *, tile_rows=None, max_block_bytes=None):
    """L2-normalize each row of a (B, D) array.

    Equivalent to PyTorch `Normalize(power=2, dim=1)` on a 2-D tensor:
        out = x / sqrt(sum(x**2, axis=1, keepdims=True))
    """
    B, D = (int(s) for s in x.shape)
    itemsize = jnp.dtype(x.dtype).itemsize
    sub = _sublane_multiple(itemsize)
    vmem_cap = _vmem_capacity_bytes()

    # Per-block byte budget: large enough to amortize per-grid-step overhead,
    # small enough that double-buffered in+out tiles fit this generation's VMEM.
    if max_block_bytes is None:
        max_block_bytes = max(1 << 20, min(8 << 20, vmem_cap // 10))
    max_block_bytes = int(max_block_bytes)

    row_bytes = D * itemsize

    # ---------------------------------------------------------------- fast path
    if sub * row_bytes <= max_block_bytes:
        if tile_rows is None:
            rows = (max_block_bytes // row_bytes // sub) * sub
            # Keep >= ~8 grid steps for large batches so the parallel axis can
            # shard across TensorCores (v7x megacore) and the pipeline has depth.
            rows = min(rows, _round_up(pl.cdiv(B, 8), sub))
            rows = max(sub, rows)
        else:
            rows = max(sub, (int(tile_rows) // sub) * sub)
        if rows >= B:
            rows = B  # single block; block dims == full array dims is always legal
        grid = (pl.cdiv(B, rows),)

        block_bytes = rows * row_bytes
        vmem_limit = int(min(int(0.75 * vmem_cap),
                             max(16 << 20, 5 * block_bytes + (4 << 20))))

        cost = pl.CostEstimate(
            flops=3 * B * D,           # square + reduce-add + scale
            transcendentals=B,         # one rsqrt per row
            bytes_accessed=2 * B * D * itemsize,
        )

        return pl.pallas_call(
            _normalize_kernel,
            out_shape=jax.ShapeDtypeStruct((B, D), x.dtype),
            grid_spec=pltpu.PrefetchScalarGridSpec(
                num_scalar_prefetch=0,
                grid=grid,
                in_specs=[pl.BlockSpec((rows, D), lambda i: (i, 0))],
                out_specs=pl.BlockSpec((rows, D), lambda i: (i, 0)),
            ),
            compiler_params=pltpu.CompilerParams(
                dimension_semantics=("parallel",),
                vmem_limit_bytes=vmem_limit,
            ),
            cost_estimate=cost,
        )(x)

    # --------------------------------------------------------------- large-D path
    rows = sub if tile_rows is None else max(sub, (int(tile_rows) // sub) * sub)
    if rows >= B:
        rows = B
    d_tile = (max_block_bytes // max(1, rows * itemsize) // 128) * 128
    d_tile = max(128, min(d_tile, _round_up(D, 128)))

    grid = (pl.cdiv(B, rows), 2, pl.cdiv(D, d_tile))
    block_bytes = rows * d_tile * itemsize
    vmem_limit = int(min(int(0.75 * vmem_cap),
                         max(16 << 20, 5 * block_bytes + (4 << 20))))

    cost = pl.CostEstimate(
        flops=3 * B * D,
        transcendentals=B,
        bytes_accessed=3 * B * D * itemsize,  # x read twice, out written once
    )

    kernel = functools.partial(_normalize_split_kernel, d_total=D, d_tile=d_tile)

    return pl.pallas_call(
        kernel,
        out_shape=jax.ShapeDtypeStruct((B, D), x.dtype),
        grid_spec=pltpu.PrefetchScalarGridSpec(
            num_scalar_prefetch=0,
            grid=grid,
            in_specs=[pl.BlockSpec((rows, d_tile), lambda i, p, k: (i, k))],
            # During phase 0 the output block index is pinned to (i, 0) so no
            # garbage write-backs happen while the row sums are accumulating.
            out_specs=pl.BlockSpec((rows, d_tile), lambda i, p, k: (i, p * k)),
            scratch_shapes=[pltpu.VMEM((rows, 1), jnp.float32)],
        ),
        compiler_params=pltpu.CompilerParams(
            dimension_semantics=("parallel", "arbitrary", "arbitrary"),
            vmem_limit_bytes=vmem_limit,
        ),
        cost_estimate=cost,
    )(x)


def _reference(x):
    # Pure-JAX replica of the PyTorch forward (power=2, dim=1).
    xf = x.astype(jnp.float32)
    norm = jnp.sum(xf ** POWER, axis=1, keepdims=True) ** (1.0 / POWER)
    return xf / norm


if __name__ == "__main__":
    key = jax.random.PRNGKey(0)

    # Case 1: batch=8, feat_dim=128 (single lane-aligned block).
    x1 = jax.random.normal(key, (8, 128), dtype=jnp.float32)
    out1 = jax.block_until_ready(normalize(x1))
    ref1 = _reference(x1)
    assert out1.shape == x1.shape and out1.dtype == x1.dtype
    assert jnp.allclose(out1, ref1, atol=1e-5, rtol=1e-5), "mismatch (case 1)"

    # Case 2: batch not divisible by the tile — ragged last block, no pad/slice.
    x2 = jax.random.normal(jax.random.PRNGKey(1), (50, 256), dtype=jnp.float32)
    out2 = jax.block_until_ready(normalize(x2, tile_rows=16))
    ref2 = _reference(x2)
    assert out2.shape == x2.shape and out2.dtype == x2.dtype
    assert jnp.allclose(out2, ref2, atol=1e-5, rtol=1e-5), "mismatch (case 2)"

    # Case 3: bf16 input — exercises the 16-row sublane alignment.
    x3 = jax.random.normal(jax.random.PRNGKey(2), (24, 128), dtype=jnp.bfloat16)
    out3 = jax.block_until_ready(normalize(x3))
    ref3 = _reference(x3)
    assert out3.shape == x3.shape and out3.dtype == x3.dtype
    assert jnp.allclose(out3.astype(jnp.float32), ref3, atol=2e-2, rtol=2e-2), \
        "mismatch (case 3)"

    # Case 4: force the large-D feature-split path (tiny block budget), with a
    # lane-ragged feature dim to exercise the in-kernel masking.
    x4 = jax.random.normal(jax.random.PRNGKey(3), (16, 320), dtype=jnp.float32)
    out4 = jax.block_until_ready(normalize(x4, max_block_bytes=4096))
    ref4 = _reference(x4)
    assert out4.shape == x4.shape and out4.dtype == x4.dtype
    assert jnp.allclose(out4, ref4, atol=1e-5, rtol=1e-5), "mismatch (case 4)"

    print("KERNEL_OK")
</pallas_src>

<mosaic_0001>
module attributes {stable_mosaic.version = 11 : i64} {
  func.func @_normalize_kernel(%arg0: i32, %arg1: memref<8x128xf32, #tpu.memory_space<vmem>>, %arg2: memref<8x128xf32, #tpu.memory_space<vmem>>) attributes {dimension_semantics = [#tpu.dimension_semantics<parallel>], iteration_bounds = array<i64: 1>, scalar_prefetch = 0 : i64, scratch_operands = 0 : i64, tpu.core_type = #tpu.core_type<tc>, window_params = [{transform_indices = @transform_0, window_bounds = array<i64: 8, 128>}, {transform_indices = @transform_1, window_bounds = array<i64: 8, 128>}]} {
    %c0 = arith.constant 0 : index
    %c0_0 = arith.constant 0 : index
    %0 = vector.load %arg1[%c0, %c0_0] : memref<8x128xf32, #tpu.memory_space<vmem>>, vector<8x128xf32>
    %1 = arith.mulf %0, %0 : vector<8x128xf32>
    %cst = arith.constant dense<0.000000e+00> : vector<8xf32>
    %2 = vector.multi_reduction <add>, %1, %cst [1] : vector<8x128xf32> to vector<8xf32>
    %3 = vector.shape_cast %2 : vector<8xf32> to vector<8x1xf32>
    %4 = math.rsqrt %3 : vector<8x1xf32>
    %5 = vector.broadcast %4 : vector<8x1xf32> to vector<8x128xf32>
    %6 = arith.mulf %0, %5 : vector<8x128xf32>
    %c0_1 = arith.constant 0 : index
    %c0_2 = arith.constant 0 : index
    %7 = vector.load %arg2[%c0_1, %c0_2] : memref<8x128xf32, #tpu.memory_space<vmem>>, vector<8x128xf32>
    tpu.vector_store %arg2[%c0_1, %c0_2], %6 {strides = array<i32>} : memref<8x128xf32, #tpu.memory_space<vmem>>, vector<8x128xf32>,
    return
  }
  func.func @transform_0(%arg0: i32) -> (i32, i32) {
    %c0_i32 = arith.constant 0 : i32
    %c0_i32_0 = arith.constant 0 : i32
    return %arg0, %c0_i32 : i32, i32
  }
  func.func @transform_1(%arg0: i32) -> (i32, i32) {
    %c0_i32 = arith.constant 0 : i32
    %c0_i32_0 = arith.constant 0 : i32
    return %arg0, %c0_i32 : i32, i32
  }
}

</mosaic_0001>

<llo_original>
// kernel: tpu_custom_call.1
$region0: #{tpu_custom_call.1}
  #allocation0 [shape = 'u32[]', space=smem, size = 0x4, offset = 0x4, fixed_abs, tag = 'smem constant byte address 0x4 - core index']
  #allocation1 [shape = 'u32[72,128]{1,0:T(1,128)}', space=vmem, size = 0x9000, scoped, tag = 'internal scratch']
  %s0 = inlined_call_operand.hbm [shape: f32[8,128], index: 0, kind: input, shape index: {}]
  %s1 = inlined_call_operand.hbm [shape: f32[8,128], index: 1, kind: output, shape index: {}]
  %s2 = sld [smem:[#allocation0]]
  $region18: #{tpu_custom_call.1} parent=0
    _
  %s4 = ssub.s32 1, %s2
  %s5 = scalar_select 0, %s4, %s2
  $region1: #{tpu_custom_call.1} parent=0
    #allocation2 [shape = 'u8[4096]{0}', space=vmem, size = 0x1000, scoped, tag = 'input window, operand 0, single buffered']
    #allocation3 [shape = 's32[1]{0}', space=sflag, size = 0x4, scoped, tag = 'scoped memory for tpu_custom_call.1']
    #allocation4 [shape = 's32[1]{0}', space=sflag, size = 0x4, scoped, tag = 'scoped memory for tpu_custom_call.1']
    #allocation5 [shape = 'u8[4096]{0}', space=vmem, size = 0x1000, scoped, tag = 'output window, operand 0, single buffered']
    %6 = vsyncpa [#allocation3], 0
    %7 = vsyncpa [#allocation4], 0
    // Predicated region
    $region2: #{tpu_custom_call.1} parent=1 // pred_check
      _
    $region3: #{tpu_custom_call.1} parent=1 // pred_check_branch
      %9 = sbr.rel (0) target = $region5
    $region4: #{tpu_custom_call.1} parent=1 // pred_region
      %11 = vsyncadd [#allocation3], 0
      %s13 = sshll.u32 %s0, 4
      %s14 = int_to_ptr.hbm [resolvable:$true] %s13
      %s15 = sshll.u32 [#allocation2], 4
      %s16 = int_to_ptr.vmem [resolvable:$true] %s15
      %18 = dma.hbm_to_vmem [thread:$0]  %s14, 128, %s16, [#allocation3]
    $region5: #{tpu_custom_call.1} parent=1 // pred_fallthru
      _
    // Predicated region
    $region6: #{tpu_custom_call.1} parent=1 // pred_check
      _
    $region7: #{tpu_custom_call.1} parent=1 // pred_check_branch
      %20 = sbr.rel (0) target = $region9
    $region8: #{tpu_custom_call.1} parent=1 // pred_region
      %22 = dma.done [#allocation3], 128
    $region9: #{tpu_custom_call.1} parent=1 // pred_fallthru
      _
    %v23 = vld [vmem:[#allocation2] sm:$0xff]
    %v24 = vmul.f32 %v23, %v23
    %25 = vadd.xlane.f32.xlu0 %v24
    %v26 = vpop.xlane.xlu0 %25
    %v27 = vrsqrt.pop %v26
    %v28 = vmul.f32 %v27, %v26
    %v29 = vmul.f32 %v28, %v27
    %v30 = vmul.f32 0.5, %v29
    %v31 = vsub.f32 1.5, %v30
    %v32 = vmul.f32 %v27, %v31
    %vm33 = vweird.f32 %v26
    %vm34 = vweird.f32 %v27
    %vm35 = vmor %vm33, %vm34
    %v36 = vsel %vm35, %v27, %v32
    %v37 = vmul.f32 %v23, %v36
    %38 = vst [vmem:[#allocation5] sm:$0xff] %v37
    // Predicated region
    $region10: #{tpu_custom_call.1} parent=1 // pred_check
      _
    $region11: #{tpu_custom_call.1} parent=1 // pred_check_branch
      %40 = sbr.rel (0) target = $region13
    $region12: #{tpu_custom_call.1} parent=1 // pred_region
      %42 = vsyncadd [#allocation4], 0
      %s44 = sshll.u32 [#allocation5], 4
      %s45 = int_to_ptr.vmem [resolvable:$true] %s44
      %s46 = sshll.u32 %s1, 4
      %s47 = int_to_ptr.hbm [resolvable:$true] %s46
      %49 = dma.vmem_to_hbm [thread:$0]  %s45, 128, %s47, [#allocation4]
    $region13: #{tpu_custom_call.1} parent=1 // pred_fallthru
      _
    // Predicated region
    $region14: #{tpu_custom_call.1} parent=1 // pred_check
      _
    $region15: #{tpu_custom_call.1} parent=1 // pred_check_branch
      %51 = sbr.rel (0) target = $region17
    $region16: #{tpu_custom_call.1} parent=1 // pred_region
      %53 = dma.done [#allocation4], 128
    $region17: #{tpu_custom_call.1} parent=1 // pred_fallthru
      _
    %54 = vsyncpa [#allocation3], 1
    %55 = vsyncpa [#allocation4], 1

</llo_original>
